<compile_context>
chip_gen: v6e
topology: v6e:2x2x1
jax: 0.10.0
libtpu: 0.0.40
codegen_flags: <defaults>
</compile_context>

<pallas_src>
import jax
import jax.numpy as jnp
from jax.experimental import pallas as pl
from jax.experimental.pallas import tpu as pltpu


def _abs_kernel(x_ref, o_ref):
    # Pure elementwise hot path on the VPU.
    o_ref[...] = jnp.abs(x_ref[...])


# Packed-sublane multiple per element size (bytes): f32 -> 8, bf16 -> 16, i8/fp8 -> 32.
_SUBLANE_BY_ITEMSIZE = {1: 32, 2: 16, 4: 8}

# Candidate lane widths, widest (most lane-dense) first.
_WIDTH_CANDIDATES = (8192, 4096, 2048, 1024, 512, 256, 128)


def _vmem_budget():
    """Generation-aware (block_bytes_per_buffer, vmem_limit_bytes)."""
    cap = None
    try:
        cap = getattr(pltpu.get_tpu_info(), "vmem_capacity_bytes", None)
    except Exception:
        cap = None
    if cap is not None and cap >= 100 * 1024 * 1024:
        # v5e / v6e: 128 MiB physical VMEM.  4 live buffers (in/out x double
        # buffer) at 8 MiB each = 32 MiB, well inside a 64 MiB scoped limit.
        return 8 * 1024 * 1024, 64 * 1024 * 1024
    # v7x (64 MiB physical) or unknown chip: stay conservative.
    return 4 * 1024 * 1024, 32 * 1024 * 1024


def abs_activation(x: jax.Array) -> jax.Array:
    """Elementwise |x| via a Pallas TPU kernel. Accepts any shape / numeric dtype."""
    orig_shape = x.shape
    dtype = x.dtype
    n = x.size
    if n == 0:
        return x

    # Complex abs changes the result dtype and bool has no packed-sublane
    # entry; dispatch those straight to XLA (matches torch.abs semantics).
    if jnp.issubdtype(dtype, jnp.complexfloating) or dtype == jnp.bool_:
        return jnp.abs(x)

    itemsize = jnp.dtype(dtype).itemsize
    sublane = _SUBLANE_BY_ITEMSIZE.get(itemsize, 8)
    block_bytes, vmem_limit = _vmem_budget()

    flat = x.reshape(-1)  # layout no-op for a contiguous array

    # ---- zero-copy 2D factorization: widest lane width dividing n exactly.
    width = None
    for cand in _WIDTH_CANDIDATES:
        if n % cand == 0:
            width = cand
            break

    if width is not None:
        # Common path: (rows, width) slab, grid over rows.
        rows = n // width
        rpb = max(sublane, block_bytes // (width * itemsize))
        rpb = (rpb // sublane) * sublane
        rpb = min(rpb, rows)
        # Guarantee >= 2 grid steps when rows allow it, so v7x's second
        # TensorCore isn't idle (dimension_semantics="parallel" shards steps).
        if rpb >= rows and rows >= 2 * sublane:
            rpb = max(sublane, ((rows // 2) // sublane) * sublane)
        block = (rpb, width)
        index_map = lambda i: (i, 0)
        grid = (pl.cdiv(rows, rpb),)
    else:
        # Awkward element count (not divisible by 128): tile the flat array as
        # (1, n) along the lane dim.  Zero padding / zero extra HBM passes;
        # only the last block's stores are lane-masked.  A (1, L) block uses
        # ~32*L bytes of VMEM (one of 8 sublanes populated), so size by VMEM
        # footprint rather than data bytes.
        rows, width = 1, n
        lane_block = max(128, ((block_bytes // 32) // 128) * 128)
        lane_block = min(lane_block, n)  # (1, n) full block is constraint-exempt
        block = (1, lane_block)
        index_map = lambda j: (0, j)
        grid = (pl.cdiv(n, lane_block),)

    x2d = flat.reshape(rows, width)

    out2d = pl.pallas_call(
        _abs_kernel,
        out_shape=jax.ShapeDtypeStruct((rows, width), dtype),
        grid_spec=pltpu.PrefetchScalarGridSpec(
            num_scalar_prefetch=0,
            grid=grid,
            in_specs=[pl.BlockSpec(block, index_map)],
            out_specs=pl.BlockSpec(block, index_map),
        ),
        compiler_params=pltpu.CompilerParams(
            dimension_semantics=("parallel",),
            vmem_limit_bytes=vmem_limit,
        ),
    )(x2d)

    return out2d.reshape(orig_shape)


if __name__ == "__main__":
    key = jax.random.PRNGKey(0)

    # NCHW input consistent with a conv-style activation module.
    x = jax.random.normal(key, (2, 4, 16, 16), dtype=jnp.float32)
    y = abs_activation(x)
    jax.block_until_ready(y)
    assert y.shape == x.shape and y.dtype == x.dtype
    assert jnp.array_equal(y, jnp.abs(x)), "f32 mismatch vs jnp.abs reference"

    # bf16 path (packed sublane = 16).
    xb = jax.random.normal(key, (2, 4, 16, 16), dtype=jnp.bfloat16)
    yb = abs_activation(xb)
    jax.block_until_ready(yb)
    assert yb.dtype == xb.dtype
    assert jnp.array_equal(yb, jnp.abs(xb)), "bf16 mismatch vs jnp.abs reference"

    # Awkward size (105 elements, not divisible by 128) -> (1, n) lane-tiled path.
    xo = jax.random.normal(key, (3, 5, 7), dtype=jnp.float32)
    yo = abs_activation(xo)
    jax.block_until_ready(yo)
    assert yo.shape == xo.shape
    assert jnp.array_equal(yo, jnp.abs(xo)), "odd-size mismatch vs jnp.abs reference"

    # Slightly larger input exercising the multi-step grid + >=2-step split.
    xl = jax.random.normal(key, (8, 8, 128, 128), dtype=jnp.float32)
    yl = abs_activation(xl)
    jax.block_until_ready(yl)
    assert jnp.array_equal(yl, jnp.abs(xl)), "large-input mismatch vs jnp.abs reference"

    print("KERNEL_OK")
</pallas_src>

<mosaic_0001>
module attributes {stable_mosaic.version = 11 : i64} {
  func.func @_abs_kernel(%arg0: i32, %arg1: memref<1x2048xf32, #tpu.memory_space<vmem>>, %arg2: memref<1x2048xf32, #tpu.memory_space<vmem>>) attributes {dimension_semantics = [#tpu.dimension_semantics<parallel>], iteration_bounds = array<i64: 1>, scalar_prefetch = 0 : i64, scratch_operands = 0 : i64, tpu.core_type = #tpu.core_type<tc>, window_params = [{transform_indices = @transform_0, window_bounds = array<i64: 1, 2048>}, {transform_indices = @transform_1, window_bounds = array<i64: 1, 2048>}]} {
    %c0 = arith.constant 0 : index
    %c0_0 = arith.constant 0 : index
    %0 = vector.load %arg1[%c0, %c0_0] : memref<1x2048xf32, #tpu.memory_space<vmem>>, vector<1x2048xf32>
    %1 = math.absf %0 : vector<1x2048xf32>
    %c0_1 = arith.constant 0 : index
    %c0_2 = arith.constant 0 : index
    %2 = vector.load %arg2[%c0_1, %c0_2] : memref<1x2048xf32, #tpu.memory_space<vmem>>, vector<1x2048xf32>
    tpu.vector_store %arg2[%c0_1, %c0_2], %1 {strides = array<i32>} : memref<1x2048xf32, #tpu.memory_space<vmem>>, vector<1x2048xf32>,
    return
  }
  func.func @transform_0(%arg0: i32) -> (i32, i32) {
    %c0_i32 = arith.constant 0 : i32
    %c0_i32_0 = arith.constant 0 : i32
    return %arg0, %c0_i32 : i32, i32
  }
  func.func @transform_1(%arg0: i32) -> (i32, i32) {
    %c0_i32 = arith.constant 0 : i32
    %c0_i32_0 = arith.constant 0 : i32
    return %arg0, %c0_i32 : i32, i32
  }
}

</mosaic_0001>

<llo_original>
// kernel: tpu_custom_call.1
$region0: #{tpu_custom_call.1}
  #allocation0 [shape = 'u32[]', space=smem, size = 0x4, offset = 0x4, fixed_abs, tag = 'smem constant byte address 0x4 - core index']
  #allocation1 [shape = 'u32[144,128]{1,0:T(1,128)}', space=vmem, size = 0x12000, scoped, tag = 'internal scratch']
  %s0 = inlined_call_operand.hbm [shape: f32[1,2048], index: 0, kind: input, shape index: {}]
  %s1 = inlined_call_operand.hbm [shape: f32[1,2048], index: 1, kind: output, shape index: {}]
  %s2 = sld [smem:[#allocation0]]
  $region18: #{tpu_custom_call.1} parent=0
    _
  %s4 = ssub.s32 1, %s2
  %s5 = scalar_select 0, %s4, %s2
  $region1: #{tpu_custom_call.1} parent=0
    #allocation2 [shape = 'u8[8192]{0}', space=vmem, size = 0x2000, scoped, tag = 'input window, operand 0, single buffered']
    #allocation3 [shape = 's32[1]{0}', space=sflag, size = 0x4, scoped, tag = 'scoped memory for tpu_custom_call.1']
    #allocation4 [shape = 's32[1]{0}', space=sflag, size = 0x4, scoped, tag = 'scoped memory for tpu_custom_call.1']
    #allocation5 [shape = 'u8[8192]{0}', space=vmem, size = 0x2000, scoped, tag = 'output window, operand 0, single buffered']
    %6 = vsyncpa [#allocation3], 0
    %7 = vsyncpa [#allocation4], 0
    // Predicated region
    $region2: #{tpu_custom_call.1} parent=1 // pred_check
      _
    $region3: #{tpu_custom_call.1} parent=1 // pred_check_branch
      %9 = sbr.rel (0) target = $region5
    $region4: #{tpu_custom_call.1} parent=1 // pred_region
      %s11 = ssub.s32 256, 256
      %12 = vsyncadd [#allocation3], %s11
      %s14 = sshll.u32 [#allocation2], 4
      %s15 = int_to_ptr.vmem [resolvable:$true] %s14
      %17 = dma.hbm_to_vmem [thread:$0]  %s0, 256, %s15, [#allocation3]
    $region5: #{tpu_custom_call.1} parent=1 // pred_fallthru
      _
    // Predicated region
    $region6: #{tpu_custom_call.1} parent=1 // pred_check
      _
    $region7: #{tpu_custom_call.1} parent=1 // pred_check_branch
      %19 = sbr.rel (0) target = $region9
    $region8: #{tpu_custom_call.1} parent=1 // pred_region
      %20 = dma.done [#allocation3], 256
    $region9: #{tpu_custom_call.1} parent=1 // pred_fallthru
      _
    %v21 = vld [vmem:[#allocation2] sm:$0xff]
    %v22 = vld [vmem:[#allocation2 + $0x8] sm:$0xff]
    %v23 = vand.u32 2147483647, %v21
    %v24 = vand.u32 2147483647, %v22
    %25 = vst [vmem:[#allocation5] sm:$0xff] %v23
    %26 = vst [vmem:[#allocation5 + $0x8] sm:$0xff] %v24
    // Predicated region
    $region10: #{tpu_custom_call.1} parent=1 // pred_check
      _
    $region11: #{tpu_custom_call.1} parent=1 // pred_check_branch
      %28 = sbr.rel (0) target = $region13
    $region12: #{tpu_custom_call.1} parent=1 // pred_region
      %s30 = ssub.s32 256, 256
      %31 = vsyncadd [#allocation4], %s30
      %s33 = sshll.u32 [#allocation5], 4
      %s34 = int_to_ptr.vmem [resolvable:$true] %s33
      %36 = dma.vmem_to_hbm [thread:$0]  %s34, 256, %s1, [#allocation4]
    $region13: #{tpu_custom_call.1} parent=1 // pred_fallthru
      _
    // Predicated region
    $region14: #{tpu_custom_call.1} parent=1 // pred_check
      _
    $region15: #{tpu_custom_call.1} parent=1 // pred_check_branch
      %38 = sbr.rel (0) target = $region17
    $region16: #{tpu_custom_call.1} parent=1 // pred_region
      %39 = dma.done [#allocation4], 256
    $region17: #{tpu_custom_call.1} parent=1 // pred_fallthru
      _
    %40 = vsyncpa [#allocation3], 1
    %41 = vsyncpa [#allocation4], 1

</llo_original>
